<compile_context>
chip_gen: v7x
topology: tpu7x:2x2x1
jax: 0.10.0
libtpu: 0.0.40
codegen_flags: <defaults>
</compile_context>

<pallas_src>
import functools

import jax
import jax.numpy as jnp
from jax import lax
from jax.experimental import pallas as pl
from jax.experimental.pallas import tpu as pltpu


def _round_up(x, m):
    return ((x + m - 1) // m) * m


def _cdiv(a, b):
    return -(-a // b)


def _conf_ce_kernel(pred_ref, tgt_ref, conf_ref, out_ref, acc_ref, *,
                    n_valid, tile_m, tiles_per_core, num_classes):
    p = pl.program_id(0)   # core-split axis ("parallel")
    i = pl.program_id(1)   # reduction axis over row tiles ("arbitrary")

    @pl.when(i == 0)
    def _():
        acc_ref[...] = jnp.zeros_like(acc_ref)

    # ---- per-row log-softmax pieces; single full-width temporary t = x - m ----
    x = pred_ref[...].astype(jnp.float32)                          # (TM, C)
    m = jnp.max(x, axis=-1, keepdims=True)                         # (TM, 1)
    t = x - m                                                      # (TM, C)
    lse_m = jnp.log(jnp.sum(jnp.exp(t), axis=-1, keepdims=True))   # lse - m      (TM, 1)
    sum_t = jnp.sum(t, axis=-1, keepdims=True)                     # sum_x - C*m  (TM, 1)

    tgt = tgt_ref[...]                                             # (TM, 1) int32
    conf = conf_ref[...].astype(jnp.float32)                       # (TM, 1)

    # x[n, target[n]] - m[n] via a (1, C) lane-iota compare (no (TM, C) int32 temp).
    col = lax.broadcasted_iota(jnp.int32, (1, num_classes), 1)     # (1, C)
    t_tgt = jnp.sum(jnp.where(col == tgt, t, 0.0),
                    axis=-1, keepdims=True)                        # (TM, 1)

    # sum_c true_dist*logp = smooth*(sum_x - C*lse) + (conf - smooth)*(x[tgt] - lse);
    # the row max m cancels exactly, leaving only (... - lse_m) terms.
    smooth = (1.0 - conf) / jnp.float32(num_classes - 1)           # (TM, 1)
    per_row = -(smooth * (sum_t - num_classes * lse_m)
                + (conf - smooth) * (t_tgt - lse_m))               # (TM, 1)

    # Mask out-of-range rows (partial final block + duplicated clamped blocks).
    # Must stay a *select*: padded rows may contain garbage (NaN/Inf).
    row0 = (p * tiles_per_core + i) * tile_m                       # logical (unclamped) start
    row_idx = row0 + lax.broadcasted_iota(jnp.int32, (tile_m, 1), 0)
    per_row = jnp.where(row_idx < n_valid, per_row, 0.0)

    acc_ref[...] += per_row

    @pl.when(i == pl.num_programs(1) - 1)
    def _():
        out_ref[...] = jnp.broadcast_to(jnp.sum(acc_ref[...]), out_ref.shape)


def conf_cross_entropy_loss(pred, target, conf, *, num_cores=2, tile_m=None,
                            vmem_block_budget_bytes=None):
    """Pallas TPU implementation of ConfCrossEntropyLoss.forward."""
    N, C = pred.shape
    if C < 2:
        raise ValueError("ConfCrossEntropyLoss requires at least 2 classes (division by C-1).")

    itemsize = jnp.dtype(pred.dtype).itemsize
    sublane = max(8, 32 // itemsize)          # f32 -> 8, bf16 -> 16, int8/fp8 -> 32

    # Generation-aware VMEM sizing (64 MiB/TC on v7x, 128 MiB on v5e/v6e).
    try:
        vmem_cap = int(getattr(pltpu.get_tpu_info(), "vmem_capacity_bytes",
                               64 * 1024 * 1024))
    except Exception:
        vmem_cap = 64 * 1024 * 1024           # conservative fallback

    if vmem_block_budget_bytes is None:
        vmem_block_budget_bytes = min(32 * 1024 * 1024, vmem_cap // 4)

    c_pad = _round_up(C, 128)                 # lane padding of the pred block in VMEM
    if tile_m is None:
        budget_rows = max(sublane, vmem_block_budget_bytes // (2 * c_pad * itemsize))
        tile_m = min(2048, (budget_rows // sublane) * sublane, _round_up(N, sublane))
        tile_m = max(sublane, int(tile_m))
    tile_m = _round_up(int(tile_m), sublane)

    num_tiles = _cdiv(N, tile_m)
    num_cores = max(1, min(int(num_cores), num_tiles))
    tiles_per_core = _cdiv(num_tiles, num_cores)
    last_blk = num_tiles - 1

    # target / conf streamed per tile as (tile_m, 1) blocks: VMEM use is independent of N
    # and no HBM-side padding copy of any input is made.
    tgt2d = target.astype(jnp.int32).reshape(N, 1)
    conf2d = conf.astype(jnp.float32).reshape(N, 1)

    def _blk(p, i):
        # Clamp so no block starts fully out of range; duplicated blocks are fully masked
        # in-kernel against the logical (unclamped) row index.
        return jnp.minimum(p * tiles_per_core + i, last_blk)

    est = (2 * tile_m * c_pad * itemsize      # pred double buffer
           + 2 * 2 * tile_m * 128 * 4         # target + conf double buffers (lane padded)
           + tile_m * 128 * 4                 # accumulator
           + 2 * num_cores * 8 * 128 * 4)     # output blocks
    vmem_limit = int(min(int(0.85 * vmem_cap),
                         max(32 * 1024 * 1024, est + 8 * 1024 * 1024)))

    kernel = functools.partial(
        _conf_ce_kernel, n_valid=N, tile_m=tile_m,
        tiles_per_core=tiles_per_core, num_classes=C)

    out = pl.pallas_call(
        kernel,
        out_shape=jax.ShapeDtypeStruct((num_cores * 8, 128), jnp.float32),
        grid_spec=pltpu.PrefetchScalarGridSpec(
            num_scalar_prefetch=0,
            grid=(num_cores, tiles_per_core),
            in_specs=[
                pl.BlockSpec((tile_m, C), lambda p, i: (_blk(p, i), 0)),   # pred (streamed)
                pl.BlockSpec((tile_m, 1), lambda p, i: (_blk(p, i), 0)),   # target (streamed)
                pl.BlockSpec((tile_m, 1), lambda p, i: (_blk(p, i), 0)),   # conf (streamed)
            ],
            out_specs=pl.BlockSpec((8, 128), lambda p, i: (p, 0)),
            scratch_shapes=[pltpu.VMEM((tile_m, 1), jnp.float32)],
        ),
        compiler_params=pltpu.CompilerParams(
            dimension_semantics=("parallel", "arbitrary"),
            vmem_limit_bytes=vmem_limit),
    )(pred, tgt2d, conf2d)

    # One partial sum per core (replicated across its (8,128) block); combine + mean here.
    partials = out[0::8, 0]
    return jnp.sum(partials) / jnp.float32(N)


def _reference(pred, target, conf):
    C = pred.shape[-1]
    logp = jax.nn.log_softmax(pred.astype(jnp.float32), axis=-1)
    smooth = (1.0 - conf) / (C - 1)
    true_dist = jnp.where(
        jnp.arange(C)[None, :] == target[:, None], conf[:, None], smooth[:, None])
    return jnp.mean(jnp.sum(-true_dist * logp, axis=-1))


if __name__ == "__main__":
    key = jax.random.PRNGKey(0)
    k1, k2, k3 = jax.random.split(key, 3)

    # Small config consistent with the module: 16 samples, 16 classes.
    N, C = 16, 16
    pred = jax.random.normal(k1, (N, C), dtype=jnp.float32)
    target = jax.random.randint(k2, (N,), 0, C, dtype=jnp.int32)
    conf = jax.random.uniform(k3, (N,), dtype=jnp.float32, minval=0.5, maxval=1.0)

    loss = conf_cross_entropy_loss(pred, target, conf)
    jax.block_until_ready(loss)
    ref = _reference(pred, target, conf)
    assert jnp.allclose(loss, ref, rtol=1e-5, atol=1e-5), (loss, ref)

    # Second config: multi-step accumulation, core split, unpadded partial final block and a
    # duplicated (clamped + fully masked) tile — no jnp.pad of pred anywhere.
    N2, C2 = 200, 60
    pred2 = jax.random.normal(k1, (N2, C2), dtype=jnp.float32)
    target2 = jax.random.randint(k2, (N2,), 0, C2, dtype=jnp.int32)
    conf2 = jax.random.uniform(k3, (N2,), dtype=jnp.float32, minval=0.3, maxval=1.0)

    loss2 = conf_cross_entropy_loss(pred2, target2, conf2, tile_m=32)
    jax.block_until_ready(loss2)
    ref2 = _reference(pred2, target2, conf2)
    assert jnp.allclose(loss2, ref2, rtol=1e-5, atol=1e-5), (loss2, ref2)

    print("KERNEL_OK")
</pallas_src>

<mosaic_0001>
module attributes {stable_mosaic.version = 11 : i64} {
  func.func @_conf_ce_kernel(%arg0: i32, %arg1: i32, %arg2: memref<16x16xf32, #tpu.memory_space<vmem>>, %arg3: memref<16x1xi32, #tpu.memory_space<vmem>>, %arg4: memref<16x1xf32, #tpu.memory_space<vmem>>, %arg5: memref<8x128xf32, #tpu.memory_space<vmem>>, %arg6: memref<16x1xf32, #tpu.memory_space<vmem>>) attributes {dimension_semantics = [#tpu.dimension_semantics<parallel>, #tpu.dimension_semantics<arbitrary>], iteration_bounds = array<i64: 1, 1>, scalar_prefetch = 0 : i64, scratch_operands = 1 : i64, tpu.core_type = #tpu.core_type<tc>, window_params = [{transform_indices = @transform_0, window_bounds = array<i64: 16, 16>}, {transform_indices = @transform_1, window_bounds = array<i64: 16, 1>}, {transform_indices = @transform_2, window_bounds = array<i64: 16, 1>}, {transform_indices = @transform_3, window_bounds = array<i64: 8, 128>}]} {
    %c0_i32 = arith.constant 0 : i32
    %0 = arith.cmpi eq, %arg1, %c0_i32 : i32
    %1 = arith.extui %0 : i1 to i32
    %c0_i32_0 = arith.constant 0 : i32
    %2 = arith.cmpi ne, %1, %c0_i32_0 : i32
    scf.if %2 {
      %cst_22 = arith.constant 0.000000e+00 : f32
      %54 = vector.broadcast %cst_22 : f32 to vector<16x1xf32>
      %c0_23 = arith.constant 0 : index
      %c0_24 = arith.constant 0 : index
      %55 = vector.load %arg6[%c0_23, %c0_24] : memref<16x1xf32, #tpu.memory_space<vmem>>, vector<16x1xf32>
      tpu.vector_store %arg6[%c0_23, %c0_24], %54 {strides = array<i32>} : memref<16x1xf32, #tpu.memory_space<vmem>>, vector<16x1xf32>,
    } else {
    }
    %c0 = arith.constant 0 : index
    %c0_1 = arith.constant 0 : index
    %3 = vector.load %arg2[%c0, %c0_1] : memref<16x16xf32, #tpu.memory_space<vmem>>, vector<16x16xf32>
    %cst = arith.constant dense<0xFF800000> : vector<16xf32>
    %4 = vector.multi_reduction <maximumf>, %3, %cst [1] : vector<16x16xf32> to vector<16xf32>
    %5 = vector.shape_cast %4 : vector<16xf32> to vector<16x1xf32>
    %6 = vector.broadcast %5 : vector<16x1xf32> to vector<16x16xf32>
    %7 = arith.subf %3, %6 : vector<16x16xf32>
    %8 = math.exp %7 : vector<16x16xf32>
    %cst_2 = arith.constant dense<0.000000e+00> : vector<16xf32>
    %9 = vector.multi_reduction <add>, %8, %cst_2 [1] : vector<16x16xf32> to vector<16xf32>
    %10 = vector.shape_cast %9 : vector<16xf32> to vector<16x1xf32>
    %11 = math.log %10 : vector<16x1xf32>
    %cst_3 = arith.constant dense<0.000000e+00> : vector<16xf32>
    %12 = vector.multi_reduction <add>, %7, %cst_3 [1] : vector<16x16xf32> to vector<16xf32>
    %13 = vector.shape_cast %12 : vector<16xf32> to vector<16x1xf32>
    %c0_4 = arith.constant 0 : index
    %c0_5 = arith.constant 0 : index
    %14 = vector.load %arg3[%c0_4, %c0_5] : memref<16x1xi32, #tpu.memory_space<vmem>>, vector<16x1xi32>
    %c0_6 = arith.constant 0 : index
    %c0_7 = arith.constant 0 : index
    %15 = vector.load %arg4[%c0_6, %c0_7] : memref<16x1xf32, #tpu.memory_space<vmem>>, vector<16x1xf32>
    %16 = tpu.iota {dimensions = array<i32: 1>} : vector<1x16xi32>
    %17 = vector.broadcast %16 : vector<1x16xi32> to vector<16x16xi32>
    %18 = vector.broadcast %14 : vector<16x1xi32> to vector<16x16xi32>
    %19 = arith.cmpi eq, %17, %18 : vector<16x16xi32>
    %cst_8 = arith.constant 0.000000e+00 : f32
    %20 = vector.broadcast %cst_8 : f32 to vector<16x16xf32>
    %21 = arith.select %19, %7, %20 : vector<16x16xi1>, vector<16x16xf32>
    %cst_9 = arith.constant dense<0.000000e+00> : vector<16xf32>
    %22 = vector.multi_reduction <add>, %21, %cst_9 [1] : vector<16x16xf32> to vector<16xf32>
    %23 = vector.shape_cast %22 : vector<16xf32> to vector<16x1xf32>
    %cst_10 = arith.constant 1.000000e+00 : f32
    %24 = vector.broadcast %cst_10 : f32 to vector<16x1xf32>
    %25 = arith.subf %24, %15 : vector<16x1xf32>
    %cst_11 = arith.constant 1.500000e+01 : f32
    %26 = vector.broadcast %cst_11 : f32 to vector<16x1xf32>
    %27 = arith.divf %25, %26 : vector<16x1xf32>
    %cst_12 = arith.constant 1.600000e+01 : f32
    %28 = vector.broadcast %cst_12 : f32 to vector<16x1xf32>
    %29 = arith.mulf %28, %11 : vector<16x1xf32>
    %30 = arith.subf %13, %29 : vector<16x1xf32>
    %31 = arith.mulf %27, %30 : vector<16x1xf32>
    %32 = arith.subf %15, %27 : vector<16x1xf32>
    %33 = arith.subf %23, %11 : vector<16x1xf32>
    %34 = arith.mulf %32, %33 : vector<16x1xf32>
    %35 = arith.addf %31, %34 : vector<16x1xf32>
    %cst_13 = arith.constant 0.000000e+00 : f32
    %36 = vector.broadcast %cst_13 : f32 to vector<16x1xf32>
    %37 = arith.subf %36, %35 : vector<16x1xf32>
    %c1_i32 = arith.constant 1 : i32
    %38 = arith.muli %arg0, %c1_i32 : i32
    %39 = arith.addi %38, %arg1 : i32
    %c16_i32 = arith.constant 16 : i32
    %40 = arith.muli %39, %c16_i32 : i32
    %41 = tpu.iota {dimensions = array<i32: 0>} : vector<16x1xi32>
    %42 = vector.broadcast %40 : i32 to vector<16x1xi32>
    %43 = arith.addi %42, %41 : vector<16x1xi32>
    %c16_i32_14 = arith.constant 16 : i32
    %44 = vector.broadcast %c16_i32_14 : i32 to vector<16x1xi32>
    %45 = arith.cmpi slt, %43, %44 : vector<16x1xi32>
    %cst_15 = arith.constant 0.000000e+00 : f32
    %46 = vector.broadcast %cst_15 : f32 to vector<16x1xf32>
    %47 = arith.select %45, %37, %46 : vector<16x1xi1>, vector<16x1xf32>
    %c0_16 = arith.constant 0 : index
    %c0_17 = arith.constant 0 : index
    %48 = vector.load %arg6[%c0_16, %c0_17] : memref<16x1xf32, #tpu.memory_space<vmem>>, vector<16x1xf32>
    %49 = arith.addf %48, %47 : vector<16x1xf32>
    %c0_18 = arith.constant 0 : index
    %c0_19 = arith.constant 0 : index
    %50 = vector.load %arg6[%c0_18, %c0_19] : memref<16x1xf32, #tpu.memory_space<vmem>>, vector<16x1xf32>
    tpu.vector_store %arg6[%c0_18, %c0_19], %49 {strides = array<i32>} : memref<16x1xf32, #tpu.memory_space<vmem>>, vector<16x1xf32>,
    %c0_i32_20 = arith.constant 0 : i32
    %51 = arith.cmpi eq, %arg1, %c0_i32_20 : i32
    %52 = arith.extui %51 : i1 to i32
    %c0_i32_21 = arith.constant 0 : i32
    %53 = arith.cmpi ne, %52, %c0_i32_21 : i32
    scf.if %53 {
      %c0_22 = arith.constant 0 : index
      %c0_23 = arith.constant 0 : index
      %54 = vector.load %arg6[%c0_22, %c0_23] : memref<16x1xf32, #tpu.memory_space<vmem>>, vector<16x1xf32>
      %55 = vector.shape_cast %54 : vector<16x1xf32> to vector<1x16x1xf32>
      %cst_24 = arith.constant dense<0.000000e+00> : vector<1xf32>
      %56 = vector.multi_reduction <add>, %55, %cst_24 [1, 2] : vector<1x16x1xf32> to vector<1xf32>
      %57 = vector.shape_cast %56 : vector<1xf32> to vector<1x1x1xf32>
      %58 = vector.extract %57[0, 0, 0] : f32 from vector<1x1x1xf32>
      %59 = vector.broadcast %58 : f32 to vector<8x128xf32>
      %c0_25 = arith.constant 0 : index
      %c0_26 = arith.constant 0 : index
      %60 = vector.load %arg5[%c0_25, %c0_26] : memref<8x128xf32, #tpu.memory_space<vmem>>, vector<8x128xf32>
      tpu.vector_store %arg5[%c0_25, %c0_26], %59 {strides = array<i32>} : memref<8x128xf32, #tpu.memory_space<vmem>>, vector<8x128xf32>,
    } else {
    }
    return
  }
  func.func @transform_0(%arg0: i32, %arg1: i32) -> (i32, i32) {
    %c1_i32 = arith.constant 1 : i32
    %0 = arith.muli %arg0, %c1_i32 : i32
    %1 = arith.addi %0, %arg1 : i32
    %c0_i32 = arith.constant 0 : i32
    %2 = arith.minsi %1, %c0_i32 : i32
    %c0_i32_0 = arith.constant 0 : i32
    %c0_i32_1 = arith.constant 0 : i32
    return %2, %c0_i32_0 : i32, i32
  }
  func.func @transform_1(%arg0: i32, %arg1: i32) -> (i32, i32) {
    %c1_i32 = arith.constant 1 : i32
    %0 = arith.muli %arg0, %c1_i32 : i32
    %1 = arith.addi %0, %arg1 : i32
    %c0_i32 = arith.constant 0 : i32
    %2 = arith.minsi %1, %c0_i32 : i32
    %c0_i32_0 = arith.constant 0 : i32
    %c0_i32_1 = arith.constant 0 : i32
    return %2, %c0_i32_0 : i32, i32
  }
  func.func @transform_2(%arg0: i32, %arg1: i32) -> (i32, i32) {
    %c1_i32 = arith.constant 1 : i32
    %0 = arith.muli %arg0, %c1_i32 : i32
    %1 = arith.addi %0, %arg1 : i32
    %c0_i32 = arith.constant 0 : i32
    %2 = arith.minsi %1, %c0_i32 : i32
    %c0_i32_0 = arith.constant 0 : i32
    %c0_i32_1 = arith.constant 0 : i32
    return %2, %c0_i32_0 : i32, i32
  }
  func.func @transform_3(%arg0: i32, %arg1: i32) -> (i32, i32) {
    %c0_i32 = arith.constant 0 : i32
    %c0_i32_0 = arith.constant 0 : i32
    return %arg0, %c0_i32 : i32, i32
  }
}

</mosaic_0001>

<llo_original>
// kernel: tpu_custom_call.1
$region0: #{tpu_custom_call.1}
  #allocation0 [shape = 'u32[]', space=smem, size = 0x4, offset = 0x4, fixed_abs, tag = 'smem constant byte address 0x4 - core index']
  #allocation1 [shape = 'u32[144,128]{1,0:T(1,128)}', space=vmem, size = 0x12000, scoped, tag = 'internal scratch']
  #allocation2 [shape = 'f32[16,1]{1,0:T(8,128)}', space=vmem, size = 0x2000, scoped, tag = 'scratch operand']
  %s0 = inlined_call_operand.vmem [shape: f32[16,16], index: 0, kind: input, shape index: {}]
  %s1 = inlined_call_operand.vmem [shape: s32[16,1], index: 1, kind: input, shape index: {}]
  %s2 = inlined_call_operand.vmem [shape: f32[16,1], index: 2, kind: input, shape index: {}]
  %s3 = inlined_call_operand.hbm [shape: f32[8,128], index: 3, kind: output, shape index: {}]
  %s4 = sld [smem:[#allocation0]]
  $region30: #{tpu_custom_call.1} parent=0
    _
  %s6 = ssub.s32 1, %s4
  %s7 = scalar_select 0, %s6, %s4
  $region1: #{tpu_custom_call.1} parent=0
    #allocation3 [shape = 'u8[4096]{0}', space=vmem, size = 0x1000, scoped, tag = 'output window, operand 0, single buffered']
    #allocation4 [shape = 's32[1]{0}', space=sflag, size = 0x4, scoped, tag = 'scoped memory for tpu_custom_call.1']
    %8 = vsyncpa [#allocation4], 0
    // Predicated region
    $region2: #{tpu_custom_call.1} parent=1 // pred_check
      _
    $region3: #{tpu_custom_call.1} parent=1 // pred_check_branch
      %10 = sbr.rel (0) target = $region5
    $region4: #{tpu_custom_call.1} parent=1 // pred_region
      %s11 = sadd.s32 0, 0
      %p12 = scmp.lt.s32.totalorder %s11, 0
      %s13 = scalar_select %p12, %s11, 0
      %s14 = smul.u32 2, %s13
      %p15 = scmp.lt.s32.totalorder %s14, 1
      %s16 = scalar_select %p15, %s14, 1
      %s17 = smul.addr %s16, 8
      %s18 = scalar_lea.vmem %s0, %s17
      %s19 = sadd.s32 0, 0
      %p20 = scmp.lt.s32.totalorder %s19, 0
      %s21 = scalar_select %p20, %s19, 0
      %s22 = smul.u32 2, %s21
    $region5: #{tpu_custom_call.1} parent=1 // pred_fallthru
      _
    // Predicated region
    $region6: #{tpu_custom_call.1} parent=1 // pred_check
      _
    $region7: #{tpu_custom_call.1} parent=1 // pred_check_branch
      %24 = sbr.rel (0) target = $region9
    $region8: #{tpu_custom_call.1} parent=1 // pred_region
      %s25 = sadd.s32 0, 0
      %p26 = scmp.lt.s32.totalorder %s25, 0
      %s27 = scalar_select %p26, %s25, 0
      %s28 = smul.u32 2, %s27
      %p29 = scmp.lt.s32.totalorder %s28, 1
      %s30 = scalar_select %p29, %s28, 1
      %s31 = smul.addr %s30, 8
      %s32 = scalar_lea.vmem %s1, %s31
      %s33 = sadd.s32 0, 0
      %p34 = scmp.lt.s32.totalorder %s33, 0
      %s35 = scalar_select %p34, %s33, 0
      %s36 = smul.u32 2, %s35
    $region9: #{tpu_custom_call.1} parent=1 // pred_fallthru
      _
    // Predicated region
    $region10: #{tpu_custom_call.1} parent=1 // pred_check
      _
    $region11: #{tpu_custom_call.1} parent=1 // pred_check_branch
      %38 = sbr.rel (0) target = $region13
    $region12: #{tpu_custom_call.1} parent=1 // pred_region
      %s39 = sadd.s32 0, 0
      %p40 = scmp.lt.s32.totalorder %s39, 0
      %s41 = scalar_select %p40, %s39, 0
      %s42 = smul.u32 2, %s41
      %p43 = scmp.lt.s32.totalorder %s42, 1
      %s44 = scalar_select %p43, %s42, 1
      %s45 = smul.addr %s44, 8
      %s46 = scalar_lea.vmem %s2, %s45
      %s47 = sadd.s32 0, 0
      %p48 = scmp.lt.s32.totalorder %s47, 0
      %s49 = scalar_select %p48, %s47, 0
      %s50 = smul.u32 2, %s49
    $region13: #{tpu_custom_call.1} parent=1 // pred_fallthru
      _
    %s51 = sadd.s32 0, 0
    %p52 = scmp.lt.s32.totalorder %s51, 0
    %s53 = scalar_select %p52, %s51, 0
    %s54 = smul.u32 2, %s53
    %p55 = scmp.lt.s32.totalorder %s54, 1
    %s56 = scalar_select %p55, %s54, 1
    %s57 = smul.addr %s56, 8
    %s58 = scalar_lea.vmem %s0, %s57
    %s59 = sadd.s32 0, 0
    %p60 = scmp.lt.s32.totalorder %s59, 0
    %s61 = scalar_select %p60, %s59, 0
    %s62 = smul.u32 2, %s61
    %p63 = scmp.lt.s32.totalorder %s62, 1
    %s64 = scalar_select %p63, %s62, 1
    %s65 = smul.addr %s64, 8
    %s66 = scalar_lea.vmem %s1, %s65
    %s67 = sadd.s32 0, 0
    %p68 = scmp.lt.s32.totalorder %s67, 0
    %s69 = scalar_select %p68, %s67, 0
    %s70 = smul.u32 2, %s69
    %p71 = scmp.lt.s32.totalorder %s70, 1
    %s72 = scalar_select %p71, %s70, 1
    %s73 = smul.addr %s72, 8
    %s74 = scalar_lea.vmem %s2, %s73
    %s75 = sadd.s32 0, 0
    %p76 = scmp.lt.s32.totalorder %s75, 0
    %s77 = scalar_select %p76, %s75, 0
    %s78 = smul.u32 2, %s77
    %p79 = scmp.lt.s32.totalorder %s78, 1
    %s80 = scalar_select %p79, %s78, 1
    %s81 = smul.addr %s80, 8
    %s82 = scalar_lea.vmem %s0, %s81
    %s83 = sadd.s32 0, 0
    %p84 = scmp.lt.s32.totalorder %s83, 0
    %s85 = scalar_select %p84, %s83, 0
    %s86 = smul.u32 2, %s85
    %s87 = sadd.s32 0, 0
    %p88 = scmp.lt.s32.totalorder %s87, 0
    %s89 = scalar_select %p88, %s87, 0
    %s90 = smul.u32 2, %s89
    %p91 = scmp.lt.s32.totalorder %s90, 1
    %s92 = scalar_select %p91, %s90, 1
    %s93 = smul.addr %s92, 8
    %s94 = scalar_lea.vmem %s1, %s93
    %s95 = sadd.s32 0, 0
    %p96 = scmp.lt.s32.totalorder %s95, 0
    %s97 = scalar_select %p96, %s95, 0
    %s98 = smul.u32 2, %s97
    %s99 = sadd.s32 0, 0
    %p100 = scmp.lt.s32.totalorder %s99, 0
    %s101 = scalar_select %p100, %s99, 0
    %s102 = smul.u32 2, %s101
    %p103 = scmp.lt.s32.totalorder %s102, 1
    %s104 = scalar_select %p103, %s102, 1
    %s105 = smul.addr %s104, 8
    %s106 = scalar_lea.vmem %s2, %s105
    %s107 = sadd.s32 0, 0
    %p108 = scmp.lt.s32.totalorder %s107, 0
    %s109 = scalar_select %p108, %s107, 0
    %s110 = smul.u32 2, %s109
    %p111 = scmp.eq.s32.totalorder 0, 0
    // Predicated region
    $region14: #{tpu_custom_call.1} parent=1 // pred_check
      %p112 = pneg %p111
    $region15: #{tpu_custom_call.1} parent=1 // pred_check_branch
      %114 = sbr.rel (%p112) target = $region17
    $region16: #{tpu_custom_call.1} parent=1 // pred_region
      %vm115 = vcmask 7168
      %116 = vst.msk [vmem:[#allocation2] sm:$0xff] %vm115, 0.0
      %117 = vst.msk [vmem:[#allocation2 + $0x8] sm:$0xff] %vm115, 0.0
    $region17: #{tpu_custom_call.1} parent=1 // pred_fallthru
      _
    %v118 = vld [vmem:[%s82] sm:$0xff]
    %v119 = vld [vmem:[%s82 + $0x8] sm:$0xff]
    %vm120 = vcmask 130048
    %v121 = vsel %vm120, %v118, -inf
    %122 = vmax.xlane.f32.xlu0 %v121
    %v123 = vpop.xlane.xlu0 %122
    %v124 = vsel %vm120, %v119, -inf
    %125 = vmax.xlane.f32.xlu0 %v124
    %v126 = vpop.xlane.xlu0 %125
    %v127 = vsub.f32 %v118, %v123
    %v128 = vsub.f32 %v119, %v126
    %v129 = vmul.f32 %v127, 1.442695
    %v130 = vpow.pop %v129
    %v131 = vmul.f32 %v128, 1.442695
    %v132 = vpow.pop %v131
    %v133 = vsel %vm120, %v130, 0.0
    %134 = vadd.xlane.f32.xlu0 %v133
    %v135 = vpop.xlane.xlu0 %134
    %v136 = vsel %vm120, %v132, 0.0
    %137 = vadd.xlane.f32.xlu0 %v136
    %v138 = vpop.xlane.xlu0 %137
    %v139 = vlog2.pop %v135
    %v140 = vmul.f32 %v139, 0.6931472
    %v141 = vlog2.pop %v138
    %v142 = vmul.f32 %v141, 0.6931472
    %v143 = vsel %vm120, %v127, 0.0
    %144 = vadd.xlane.f32.xlu0 %v143
    %v145 = vpop.xlane.xlu0 %144
    %v146 = vsel %vm120, %v128, 0.0
    %147 = vadd.xlane.f32.xlu0 %v146
    %v148 = vpop.xlane.xlu0 %147
    %v149 = vld [vmem:[%s94] sm:$0xff]
    %v150 = vld [vmem:[%s94 + $0x8] sm:$0xff]
    %v151 = vld [vmem:[%s106] sm:$0xff]
    %v152 = vld [vmem:[%s106 + $0x8] sm:$0xff]
    %v153 = vlaneseq
    %v154 = vand.u32 %v153, 127
    %155 = vset.pattern.permute.xlu0 0
    %156 = vperm.xlu0 %155, %v149
    %v157 = vpop.permute.xlu0 %156
    %158 = vset.pattern.permute.xlu0 0
    %159 = vperm.xlu0 %158, %v150
    %v160 = vpop.permute.xlu0 %159
    %vm161 = vcmp.eq.s32.totalorder %v154, %v157
    %vm162 = vcmp.eq.s32.totalorder %v154, %v160
    %v163 = vsel %vm161, %v127, 0.0
    %v164 = vsel %vm162, %v128, 0.0
    %v165 = vsel %vm120, %v163, 0.0
    %166 = vadd.xlane.f32.xlu0 %v165
    %v167 = vpop.xlane.xlu0 %166
    %v168 = vsel %vm120, %v164, 0.0
    %169 = vadd.xlane.f32.xlu0 %v168
    %v170 = vpop.xlane.xlu0 %169
    %v171 = vsub.f32 1.0, %v151
    %v172 = vsub.f32 1.0, %v152
    %v173 = vrcp.pop 15.0
    %v174 = vmul.f32 %v171, %v173
    %v175 = vmul.f32 %v172, %v173
    %v176 = vmul.f32 %v140, 16.0
    %v177 = vmul.f32 %v142, 16.0
    %v178 = vsub.f32 %v145, %v176
    %v179 = vsub.f32 %v148, %v177
    %v180 = vmul.f32 %v174, %v178
    %v181 = vmul.f32 %v175, %v179
    %v182 = vsub.f32 %v151, %v174
    %v183 = vsub.f32 %v152, %v175
    %v184 = vsub.f32 %v167, %v140
    %v185 = vsub.f32 %v170, %v142
    %v186 = vmul.f32 %v182, %v184
    %v187 = vmul.f32 %v183, %v185
    %v188 = vadd.f32 %v180, %v186
    %v189 = vadd.f32 %v181, %v187
    %v190 = vsub.f32 0.0, %v188
    %v191 = vsub.f32 0.0, %v189
    %s192 = sadd.s32 0, 0
    %s193 = smul.u32 %s192, 16
    %v194 = vlaneseq
    %v195 = vshrl.u32 %v194, 7
    %v196 = vadd.s32 %v195, 8
    %v197 = vstv %s193
    %v198 = vadd.s32 %v197, %v195
    %v199 = vadd.s32 %v197, %v196
    %vm200 = vcmp.lt.s32.totalorder %v198, 16
    %vm201 = vcmp.lt.s32.totalorder %v199, 16
    %v202 = vsel %vm200, %v190, 0.0
    %v203 = vsel %vm201, %v191, 0.0
    %v204 = vld [vmem:[#allocation2] sm:$0xff]
    %v205 = vld [vmem:[#allocation2 + $0x8] sm:$0xff]
    %v206 = vadd.f32 %v204, %v202
    %v207 = vadd.f32 %v205, %v203
    %vm208 = vcmask 7168
    %209 = vst.msk [vmem:[#allocation2] sm:$0xff] %vm208, %v206
    %210 = vst.msk [vmem:[#allocation2 + $0x8] sm:$0xff] %vm208, %v207
    // Predicated region
    $region18: #{tpu_custom_call.1} parent=1 // pred_check
      %p211 = pneg %p111
    $region19: #{tpu_custom_call.1} parent=1 // pred_check_branch
      %213 = sbr.rel (%p211) target = $region21
    $region20: #{tpu_custom_call.1} parent=1 // pred_region
      %v214 = vld [vmem:[#allocation2] sm:$0xff]
      %v215 = vld [vmem:[#allocation2 + $0x8] sm:$0xff]
      %v216 = vsel %vm208, %v214, 0.0
      %v217 = vsel %vm208, %v215, 0.0
      %v218 = vadd.f32 %v216, %v217
      %219 = vadd.xlane.f32.xlu0 %v218
      %v220 = vpop.xlane.xlu0 %219
      %v221 = vrot.slane %v220, 4
      %v222 = vadd.f32 %v220, %v221
      %v223 = vrot.slane %v222, 2
      %v224 = vadd.f32 %v222, %v223
      %v225 = vrot.slane %v224, 1
      %v226 = vadd.f32 %v224, %v225
      %s227 = vtos %v226
      %v228 = vstv %s227
      %229 = vst [vmem:[#allocation3] sm:$0xff] %v228
    $region21: #{tpu_custom_call.1} parent=1 // pred_fallthru
      _
    // Predicated region
    $region22: #{tpu_custom_call.1} parent=1 // pred_check
      _
    $region23: #{tpu_custom_call.1} parent=1 // pred_check_branch
      %231 = sbr.rel (0) target = $region25
    $region24: #{tpu_custom_call.1} parent=1 // pred_region
      %s233 = ssub.s32 128, 128
      %234 = vsyncadd [#allocation4], %s233
      %s236 = sshll.u32 [#allocation3], 4
      %s237 = int_to_ptr.vmem [resolvable:$true] %s236
      %239 = dma.vmem_to_hbm [thread:$0]  %s237, 128, %s3, [#allocation4]
    $region25: #{tpu_custom_call.1} parent=1 // pred_fallthru
      _
    // Predicated region
    $region26: #{tpu_custom_call.1} parent=1 // pred_check
      _
    $region27: #{tpu_custom_call.1} parent=1 // pred_check_branch
      %241 = sbr.rel (0) target = $region29
    $region28: #{tpu_custom_call.1} parent=1 // pred_region
      %242 = dma.done [#allocation4], 128
    $region29: #{tpu_custom_call.1} parent=1 // pred_fallthru
      _
    %243 = vsyncpa [#allocation4], 1

</llo_original>
